<compile_context>
chip_gen: v5e
topology: v5e:2x2
jax: 0.10.0
libtpu: 0.0.40
codegen_flags: <defaults>
</compile_context>

<pallas_src>
import numpy as np
import jax
import jax.numpy as jnp
from jax import lax
from jax.experimental import pallas as pl
from jax.experimental.pallas import tpu as pltpu


LANE = 1024      # lane-dense last dim (multiple of 128)
PARTS = 2        # leading "parallel" grid axis (uses both v7x TensorCores)
TM_MAX = 512     # max row tile -> 512*1024*4B = 2 MiB per input block


def _cdiv(a, b):
    return (a + b - 1) // b


def _round_up(x, m):
    return ((x + m - 1) // m) * m


def _make_kernel(gamma: float, alpha: float, total: int, tm: int,
                 steps: int, needs_mask: bool):
    n_sub = tm // 8
    full_rows = total // LANE
    rem = total % LANE
    c0 = 1.0 - alpha          # folded alpha factor: af = c0 + y*c1
    c1 = 2.0 * alpha - 1.0

    def kernel(pred_ref, true_ref, out_ref):
        s_idx = pl.program_id(1)

        # Output block is resident across the (arbitrary) step axis -> it is the
        # accumulator; init once per part.
        @pl.when(s_idx == 0)
        def _init():
            out_ref[...] = jnp.zeros_like(out_ref)

        x = pred_ref[...].astype(jnp.float32)
        y = true_ref[...].astype(jnp.float32)

        # One EUP exp reused for both BCE and sigmoid.
        e = jnp.exp(-jnp.abs(x))
        # Numerically-stable BCE with logits: max(x,0) - x*y + log1p(exp(-|x|))
        bce = jnp.maximum(x, 0.0) - x * y + jnp.log1p(e)
        # Stable sigmoid reusing e:  x>=0: 1/(1+e)   x<0: e/(1+e)
        p = jnp.where(x >= 0.0, 1.0, e) / (1.0 + e)

        af = c0 + y * c1                      # == y*alpha + (1-y)*(1-alpha)
        d = jnp.abs(y - p)
        if gamma == 1.5:
            mf = d * jnp.sqrt(d)              # d**1.5 without pow (no log/exp)
        elif gamma == 2.0:
            mf = d * d
        elif gamma == 1.0:
            mf = d
        else:
            mf = d ** gamma                   # generic path (pow handles d==0)

        loss = bce * (af * mf)

        if needs_mask:
            # Zero contributions from padded elements (tail of the flat tensor).
            row_base = (pl.program_id(0) * steps + s_idx) * tm
            grow = row_base + lax.broadcasted_iota(jnp.int32, (tm, LANE), 0)
            gcol = lax.broadcasted_iota(jnp.int32, (tm, LANE), 1)
            mask = (grow < full_rows) | ((grow == full_rows) & (gcol < rem))
            loss = jnp.where(mask, loss, 0.0)

        # Deferred reduction: collapse the row tile onto an (8, LANE) slab with
        # pure VPU adds (sublane/lane-preserving); the cross-lane reduce happens
        # once, outside the kernel.
        part = loss[0:8, :]
        for k in range(1, n_sub):
            part = part + loss[k * 8:(k + 1) * 8, :]
        out_ref[...] += part

    return kernel


def qfocal_loss(pred, true, gamma=1.5, alpha=0.25, reduction="mean"):
    """Pallas TPU implementation of QFocalLoss forward (scalar output)."""
    assert pred.shape == true.shape
    if reduction not in ("mean", "sum"):
        # TODO(synk): reduction='none' (unreduced elementwise output) is not
        # implemented in the Pallas path; only 'mean'/'sum' (yolov5 uses 'mean').
        raise NotImplementedError("qfocal_loss: reduction must be 'mean' or 'sum'")

    total = int(np.prod(pred.shape))
    rows = _cdiv(total, LANE)

    # Tile-row selection: MiB-scale blocks, minimal padding, multiple of 8.
    tm = min(TM_MAX, _round_up(_cdiv(rows, PARTS), 8))
    steps = _cdiv(rows, PARTS * tm)
    tm = _round_up(_cdiv(rows, PARTS * steps), 8)
    rows_padded = PARTS * tm * steps
    padded_total = rows_padded * LANE
    needs_mask = padded_total != total

    # Lane-dense re-flatten (+ zero pad of the ragged tail if needed). Keep the
    # input dtype as-is (e.g. bf16 inputs stay bf16 in HBM; cast in-kernel).
    pred_flat = pred.reshape(-1)
    true_flat = true.reshape(-1)
    if needs_mask:
        pad = padded_total - total
        pred_flat = jnp.pad(pred_flat, (0, pad))
        true_flat = jnp.pad(true_flat, (0, pad))
    pred2 = pred_flat.reshape(rows_padded, LANE)
    true2 = true_flat.reshape(rows_padded, LANE)

    kernel = _make_kernel(float(gamma), float(alpha), total, tm, steps, needs_mask)

    partials = pl.pallas_call(
        kernel,
        out_shape=jax.ShapeDtypeStruct((PARTS * 8, LANE), jnp.float32),
        grid_spec=pltpu.PrefetchScalarGridSpec(
            num_scalar_prefetch=0,
            grid=(PARTS, steps),
            in_specs=[
                pl.BlockSpec((tm, LANE), lambda p, s: (p * steps + s, 0)),
                pl.BlockSpec((tm, LANE), lambda p, s: (p * steps + s, 0)),
            ],
            out_specs=pl.BlockSpec((8, LANE), lambda p, s: (p, 0)),
        ),
        compiler_params=pltpu.CompilerParams(
            dimension_semantics=("parallel", "arbitrary"),
            vmem_limit_bytes=32 * 1024 * 1024,
        ),
    )(pred2, true2)

    loss_sum = jnp.sum(partials)
    if reduction == "mean":
        return loss_sum / jnp.float32(total)
    return loss_sum


def qfocal_loss_ref(pred, true, gamma=1.5, alpha=0.25, reduction="mean"):
    """Pure-JAX reference for validation."""
    x = pred.astype(jnp.float32)
    y = true.astype(jnp.float32)
    bce = jnp.maximum(x, 0.0) - x * y + jnp.log1p(jnp.exp(-jnp.abs(x)))
    p = jax.nn.sigmoid(x)
    af = y * alpha + (1.0 - y) * (1.0 - alpha)
    mf = jnp.abs(y - p) ** gamma
    loss = bce * af * mf
    return jnp.mean(loss) if reduction == "mean" else jnp.sum(loss)


if __name__ == "__main__":
    key = jax.random.PRNGKey(0)
    k1, k2, k3, k4 = jax.random.split(key, 4)

    # NCHW inputs: logits and soft targets (quality-focal style targets in [0,1]).
    n, c, h, w = 2, 4, 16, 16
    pred = jax.random.normal(k1, (n, c, h, w), dtype=jnp.float32) * 2.0
    true = jax.random.uniform(k2, (n, c, h, w), dtype=jnp.float32)

    out = jax.block_until_ready(qfocal_loss(pred, true, gamma=1.5, alpha=0.25))
    ref = jax.block_until_ready(qfocal_loss_ref(pred, true))
    assert np.allclose(np.asarray(out), np.asarray(ref), rtol=1e-5, atol=1e-6), (out, ref)

    # Ragged shape (exercises pad + in-kernel masking) and 'sum' reduction.
    pred_r = jax.random.normal(k3, (3, 5, 13, 17), dtype=jnp.float32) * 2.0
    true_r = jax.random.uniform(k4, (3, 5, 13, 17), dtype=jnp.float32)
    out_s = jax.block_until_ready(qfocal_loss(pred_r, true_r, reduction="sum"))
    ref_s = jax.block_until_ready(qfocal_loss_ref(pred_r, true_r, reduction="sum"))
    assert np.allclose(np.asarray(out_s), np.asarray(ref_s), rtol=1e-5, atol=1e-5), (out_s, ref_s)

    print("KERNEL_OK")
</pallas_src>

<mosaic_0001>
module attributes {stable_mosaic.version = 11 : i64} {
  func.func @kernel(%arg0: i32, %arg1: i32, %arg2: memref<8x1024xf32, #tpu.memory_space<vmem>>, %arg3: memref<8x1024xf32, #tpu.memory_space<vmem>>, %arg4: memref<8x1024xf32, #tpu.memory_space<vmem>>) attributes {dimension_semantics = [#tpu.dimension_semantics<parallel>, #tpu.dimension_semantics<arbitrary>], iteration_bounds = array<i64: 2, 1>, scalar_prefetch = 0 : i64, scratch_operands = 0 : i64, tpu.core_type = #tpu.core_type<tc>, window_params = [{transform_indices = @transform_0, window_bounds = array<i64: 8, 1024>}, {transform_indices = @transform_1, window_bounds = array<i64: 8, 1024>}, {transform_indices = @transform_2, window_bounds = array<i64: 8, 1024>}]} {
    %c0_i32 = arith.constant 0 : i32
    %0 = arith.cmpi eq, %arg1, %c0_i32 : i32
    %1 = arith.extui %0 : i1 to i32
    %c0_i32_0 = arith.constant 0 : i32
    %2 = arith.cmpi ne, %1, %c0_i32_0 : i32
    scf.if %2 {
      %cst_17 = arith.constant 0.000000e+00 : f32
      %52 = vector.broadcast %cst_17 : f32 to vector<8x1024xf32>
      %c0_18 = arith.constant 0 : index
      %c0_19 = arith.constant 0 : index
      %53 = vector.load %arg4[%c0_18, %c0_19] : memref<8x1024xf32, #tpu.memory_space<vmem>>, vector<8x1024xf32>
      tpu.vector_store %arg4[%c0_18, %c0_19], %52 {strides = array<i32>} : memref<8x1024xf32, #tpu.memory_space<vmem>>, vector<8x1024xf32>,
    } else {
    }
    %c0 = arith.constant 0 : index
    %c0_1 = arith.constant 0 : index
    %3 = vector.load %arg2[%c0, %c0_1] : memref<8x1024xf32, #tpu.memory_space<vmem>>, vector<8x1024xf32>
    %c0_2 = arith.constant 0 : index
    %c0_3 = arith.constant 0 : index
    %4 = vector.load %arg3[%c0_2, %c0_3] : memref<8x1024xf32, #tpu.memory_space<vmem>>, vector<8x1024xf32>
    %5 = math.absf %3 : vector<8x1024xf32>
    %cst = arith.constant 0.000000e+00 : f32
    %6 = vector.broadcast %cst : f32 to vector<8x1024xf32>
    %7 = arith.subf %6, %5 : vector<8x1024xf32>
    %8 = math.exp %7 : vector<8x1024xf32>
    %cst_4 = arith.constant 0.000000e+00 : f32
    %9 = vector.broadcast %cst_4 : f32 to vector<8x1024xf32>
    %10 = arith.maximumf %3, %9 : vector<8x1024xf32>
    %11 = arith.mulf %3, %4 : vector<8x1024xf32>
    %12 = arith.subf %10, %11 : vector<8x1024xf32>
    %13 = math.log1p %8 : vector<8x1024xf32>
    %14 = arith.addf %12, %13 : vector<8x1024xf32>
    %cst_5 = arith.constant 0.000000e+00 : f32
    %15 = vector.broadcast %cst_5 : f32 to vector<8x1024xf32>
    %16 = arith.cmpf oge, %3, %15 : vector<8x1024xf32>
    %cst_6 = arith.constant 1.000000e+00 : f32
    %17 = vector.broadcast %cst_6 : f32 to vector<8x1024xf32>
    %18 = arith.select %16, %17, %8 : vector<8x1024xi1>, vector<8x1024xf32>
    %cst_7 = arith.constant 1.000000e+00 : f32
    %19 = vector.broadcast %cst_7 : f32 to vector<8x1024xf32>
    %20 = arith.addf %19, %8 : vector<8x1024xf32>
    %21 = arith.divf %18, %20 : vector<8x1024xf32>
    %cst_8 = arith.constant -5.000000e-01 : f32
    %22 = vector.broadcast %cst_8 : f32 to vector<8x1024xf32>
    %23 = arith.mulf %4, %22 : vector<8x1024xf32>
    %cst_9 = arith.constant 7.500000e-01 : f32
    %24 = vector.broadcast %cst_9 : f32 to vector<8x1024xf32>
    %25 = arith.addf %24, %23 : vector<8x1024xf32>
    %26 = arith.subf %4, %21 : vector<8x1024xf32>
    %27 = math.absf %26 : vector<8x1024xf32>
    %28 = math.sqrt %27 : vector<8x1024xf32>
    %29 = arith.mulf %27, %28 : vector<8x1024xf32>
    %30 = arith.mulf %25, %29 : vector<8x1024xf32>
    %31 = arith.mulf %14, %30 : vector<8x1024xf32>
    %c1_i32 = arith.constant 1 : i32
    %32 = arith.muli %arg0, %c1_i32 : i32
    %33 = arith.addi %32, %arg1 : i32
    %c8_i32 = arith.constant 8 : i32
    %34 = arith.muli %33, %c8_i32 : i32
    %35 = tpu.iota {dimensions = array<i32: 0>} : vector<8x1024xi32>
    %36 = vector.broadcast %34 : i32 to vector<8x1024xi32>
    %37 = arith.addi %36, %35 : vector<8x1024xi32>
    %38 = tpu.iota {dimensions = array<i32: 1>} : vector<8x1024xi32>
    %c2_i32 = arith.constant 2 : i32
    %39 = vector.broadcast %c2_i32 : i32 to vector<8x1024xi32>
    %40 = arith.cmpi slt, %37, %39 : vector<8x1024xi32>
    %c2_i32_10 = arith.constant 2 : i32
    %41 = vector.broadcast %c2_i32_10 : i32 to vector<8x1024xi32>
    %42 = arith.cmpi eq, %37, %41 : vector<8x1024xi32>
    %c0_i32_11 = arith.constant 0 : i32
    %43 = vector.broadcast %c0_i32_11 : i32 to vector<8x1024xi32>
    %44 = arith.cmpi slt, %38, %43 : vector<8x1024xi32>
    %45 = arith.andi %42, %44 : vector<8x1024xi1>
    %46 = arith.ori %40, %45 : vector<8x1024xi1>
    %cst_12 = arith.constant 0.000000e+00 : f32
    %47 = vector.broadcast %cst_12 : f32 to vector<8x1024xf32>
    %48 = arith.select %46, %31, %47 : vector<8x1024xi1>, vector<8x1024xf32>
    %c0_13 = arith.constant 0 : index
    %c0_14 = arith.constant 0 : index
    %49 = vector.load %arg4[%c0_13, %c0_14] : memref<8x1024xf32, #tpu.memory_space<vmem>>, vector<8x1024xf32>
    %50 = arith.addf %49, %48 : vector<8x1024xf32>
    %c0_15 = arith.constant 0 : index
    %c0_16 = arith.constant 0 : index
    %51 = vector.load %arg4[%c0_15, %c0_16] : memref<8x1024xf32, #tpu.memory_space<vmem>>, vector<8x1024xf32>
    tpu.vector_store %arg4[%c0_15, %c0_16], %50 {strides = array<i32>} : memref<8x1024xf32, #tpu.memory_space<vmem>>, vector<8x1024xf32>,
    return
  }
  func.func @transform_0(%arg0: i32, %arg1: i32) -> (i32, i32) {
    %c1_i32 = arith.constant 1 : i32
    %0 = arith.muli %arg0, %c1_i32 : i32
    %1 = arith.addi %0, %arg1 : i32
    %c0_i32 = arith.constant 0 : i32
    %c0_i32_0 = arith.constant 0 : i32
    return %1, %c0_i32 : i32, i32
  }
  func.func @transform_1(%arg0: i32, %arg1: i32) -> (i32, i32) {
    %c1_i32 = arith.constant 1 : i32
    %0 = arith.muli %arg0, %c1_i32 : i32
    %1 = arith.addi %0, %arg1 : i32
    %c0_i32 = arith.constant 0 : i32
    %c0_i32_0 = arith.constant 0 : i32
    return %1, %c0_i32 : i32, i32
  }
  func.func @transform_2(%arg0: i32, %arg1: i32) -> (i32, i32) {
    %c0_i32 = arith.constant 0 : i32
    %c0_i32_0 = arith.constant 0 : i32
    return %arg0, %c0_i32 : i32, i32
  }
}

</mosaic_0001>

<llo_original>
// kernel: tpu_custom_call.1
$region0: #{tpu_custom_call.1}
  #allocation0 [shape = 'u32[]', space=smem, size = 0x4, offset = 0x4, fixed_abs, tag = 'smem constant byte address 0x4 - core index']
  #allocation1 [shape = 'u32[72,128]{1,0:T(1,128)}', space=vmem, size = 0x9000, scoped, tag = 'internal scratch']
  %s0 = inlined_call_operand.hbm [shape: f32[16,1024], index: 0, kind: input, shape index: {}]
  %s1 = inlined_call_operand.hbm [shape: f32[16,1024], index: 1, kind: input, shape index: {}]
  %s2 = inlined_call_operand.hbm [shape: f32[16,1024], index: 2, kind: output, shape index: {}]
  %s3 = sld [smem:[#allocation0]]
  $region53: #{tpu_custom_call.1} parent=0
    _
  %s5 = ssub.s32 1, %s3
  %s6 = scalar_select 0, %s5, %s3
  $region1: #{tpu_custom_call.1} parent=0
    #allocation2 [shape = 'u8[65536]{0}', space=vmem, size = 0x10000, scoped, tag = 'input window, operand 0']
    #allocation3 [shape = 's32[2]{0}', space=sflag, size = 0x8, scoped, tag = 'scoped memory for tpu_custom_call.1']
    #allocation4 [shape = 's32[2]{0}', space=sflag, size = 0x8, scoped, tag = 'scoped memory for tpu_custom_call.1']
    #allocation5 [shape = 'u8[65536]{0}', space=vmem, size = 0x10000, scoped, tag = 'input window, operand 1']
    #allocation6 [shape = 's32[2]{0}', space=sflag, size = 0x8, scoped, tag = 'scoped memory for tpu_custom_call.1']
    #allocation7 [shape = 'u8[65536]{0}', space=vmem, size = 0x10000, scoped, tag = 'output window, operand 0']
    %7 = vsyncpa [#allocation3], 0
    %s8 = scalar_lea.sflag [#allocation3], 1
    %9 = vsyncpa %s8, 0
    %10 = vsyncpa [#allocation6], 0
    %s11 = scalar_lea.sflag [#allocation6], 1
    %12 = vsyncpa %s11, 0
    %13 = vsyncpa [#allocation4], 0
    %s14 = scalar_lea.sflag [#allocation4], 1
    %15 = vsyncpa %s14, 0
    loop: start=0, step=1, limit=4
    $region2: #{tpu_custom_call.1} parent=1 // loop_pre_header
      _
    $region3: #{tpu_custom_call.1} parent=1 // loop_header
      %s17 = sphi 0, %s21
      %p18 = scmp.ge.s32.totalorder %s17, 4
      %s24 = sphi 0, %s36
      %s25 = sphi 0, %s32
      %s26 = sphi 0, %s24
      %s27 = sphi 0, %s25
      %s28 = sphi 0, %s26
      %s29 = sphi 0, %s27
      %s41 = sphi 0, %s43
      %s44 = sphi 0, %s41
      %s45 = sphi 0, %s44
      %s61 = sphi 0, %s45
      %s69 = sphi 0, %s71
      %s72 = sphi 0, %s69
      %s73 = sphi 0, %s72
      %s89 = sphi 0, %s73
      %s95 = sphi 0, %s97
      %s98 = sphi 0, %s95
      %s99 = sphi 0, %s98
      %s115 = sphi 0, %s99
    $region4: #{tpu_custom_call.1} parent=1 // loop_header_branch
      %20 = sbr.rel (%p18) target = $region8
    $region5: #{tpu_custom_call.1} parent=1 // loop_body
      %s22 = ssub.s32 %s17, 1
      %s23 = ssub.s32 %s17, 2
      %s30 = sadd.s32 1, %s25
      %p31 = scmp.ge.s32.totalorder %s30, 1
      %s32 = scalar_select %p31, 0, %s30
      %s33 = sadd.s32 1, %s24
      %s34 = scalar_select %p31, %s33, %s24
      %p35 = scmp.ge.s32.totalorder %s34, 2
      %s36 = scalar_select %p35, 0, %s34
      %s37 = sadd.s32 %s24, %s25
      %s38 = sadd.s32 %s36, %s32
      %s39 = ssub.s32 %s37, %s38
      %p40 = scmp.eq.s32.totalorder %s39, 0
      %s42 = sadd.s32 %s41, 1
      %s43 = scalar_select %p40, %s41, %s42
      %p46 = pneg %p40
      %p47 = scmp.eq.s32.totalorder %s17, 1
      %p48 = por %p46, %p47
      %p49 = scmp.ne.s32.totalorder %s41, %s44
      %p50 = scmp.eq.s32.totalorder %s17, 0
      %p51 = por %p49, %p50
      %p52 = scmp.ne.s32.totalorder %s41, %s44
      %p53 = scmp.eq.s32.totalorder %s22, 1
      %p54 = por %p52, %p53
      %p55 = scmp.ne.s32.totalorder %s44, %s45
      %p56 = scmp.eq.s32.totalorder %s22, 0
      %p57 = por %p55, %p56
      %p58 = scmp.ne.s32.totalorder %s44, %s45
      %p59 = scmp.eq.s32.totalorder %s23, 1
      %p60 = por %p58, %p59
      %p62 = scmp.ne.s32.totalorder %s45, %s61
      %p63 = scmp.eq.s32.totalorder %s23, 0
      %p64 = por %p62, %p63
      %s65 = sadd.s32 %s24, %s25
      %s66 = sadd.s32 %s36, %s32
      %s67 = ssub.s32 %s65, %s66
      %p68 = scmp.eq.s32.totalorder %s67, 0
      %s70 = sadd.s32 %s69, 1
      %s71 = scalar_select %p68, %s69, %s70
      %p74 = pneg %p68
      %p75 = scmp.eq.s32.totalorder %s17, 1
      %p76 = por %p74, %p75
      %p77 = scmp.ne.s32.totalorder %s69, %s72
      %p78 = scmp.eq.s32.totalorder %s17, 0
      %p79 = por %p77, %p78
      %p80 = scmp.ne.s32.totalorder %s69, %s72
      %p81 = scmp.eq.s32.totalorder %s22, 1
      %p82 = por %p80, %p81
      %p83 = scmp.ne.s32.totalorder %s72, %s73
      %p84 = scmp.eq.s32.totalorder %s22, 0
      %p85 = por %p83, %p84
      %p86 = scmp.ne.s32.totalorder %s72, %s73
      %p87 = scmp.eq.s32.totalorder %s23, 1
      %p88 = por %p86, %p87
      %p90 = scmp.ne.s32.totalorder %s73, %s89
      %p91 = scmp.eq.s32.totalorder %s23, 0
      %p92 = por %p90, %p91
      %s93 = ssub.s32 %s24, %s36
      %p94 = scmp.eq.s32.totalorder %s93, 0
      %s96 = sadd.s32 %s95, 1
      %s97 = scalar_select %p94, %s95, %s96
      %p100 = pneg %p94
      %p101 = scmp.eq.s32.totalorder %s17, 1
      %p102 = por %p100, %p101
      %p103 = scmp.ne.s32.totalorder %s95, %s98
      %p104 = scmp.eq.s32.totalorder %s17, 0
      %p105 = por %p103, %p104
      %p106 = scmp.ne.s32.totalorder %s95, %s98
      %p107 = scmp.eq.s32.totalorder %s22, 1
      %p108 = por %p106, %p107
      %p109 = scmp.ne.s32.totalorder %s98, %s99
      %p110 = scmp.eq.s32.totalorder %s22, 0
      %p111 = por %p109, %p110
      %p112 = scmp.ne.s32.totalorder %s98, %s99
      %p113 = scmp.eq.s32.totalorder %s23, 1
      %p114 = por %p112, %p113
      %p116 = scmp.ne.s32.totalorder %s99, %s115
      %p117 = scmp.eq.s32.totalorder %s23, 0
      %p118 = por %p116, %p117
      %p119 = scmp.le.s32.totalorder 1, %s17
      %p120 = scmp.lt.s32.totalorder %s17, 3
      %p121 = pnand %p119, %p120
      %p122 = pneg %p121
      // Predicated region
      $region9: #{tpu_custom_call.1} parent=5 // pred_check
        _
      $region10: #{tpu_custom_call.1} parent=5 // pred_check_branch
        %124 = sbr.rel (%p121) target = $region12
      $region11: #{tpu_custom_call.1} parent=5 // pred_region
        %s125 = ssub.s32 %s17, 1
      $region12: #{tpu_custom_call.1} parent=5 // pred_fallthru
        _
      %p126 = scmp.lt.s32.totalorder %s17, 2
      // Predicated region
      $region13: #{tpu_custom_call.1} parent=5 // pred_check
        %p127 = pneg %p126
      $region14: #{tpu_custom_call.1} parent=5 // pred_check_branch
        %129 = sbr.rel (%p127) target = $region16
      $region15: #{tpu_custom_call.1} parent=5 // pred_region
        // Predicated region
        $region17: #{tpu_custom_call.1} parent=15 // pred_check
          %p130 = pneg %p51
        $region18: #{tpu_custom_call.1} parent=15 // pred_check_branch
          %132 = sbr.rel (%p130) target = $region20
        $region19: #{tpu_custom_call.1} parent=15 // pred_region
          %s133 = sand.u32 %s41, 1
          %s134 = scalar_lea.sflag [#allocation3], %s133
          %s135 = sand.u32 %s41, 1
          %s136 = smul.addr %s135, 64
          %s137 = scalar_lea.vmem [#allocation2], %s136
          %s138 = sadd.s32 %s24, %s25
          %140 = vsyncadd %s134, 0
          %s141 = smul.addr %s138, 8
          %s142 = smul.addr %s141, 8
          %s143 = scalar_lea.hbm %s0, %s142
          %s145 = sshll.u32 %s143, 4
          %s146 = int_to_ptr.hbm [resolvable:$true] %s145
          %s147 = sshll.u32 %s137, 4
          %s148 = int_to_ptr.vmem [resolvable:$true] %s147
          %150 = dma.hbm_to_vmem [thread:$0]  %s146, 1024, %s148, %s134
        $region20: #{tpu_custom_call.1} parent=15 // pred_fallthru
          _
        // Predicated region
        $region21: #{tpu_custom_call.1} parent=15 // pred_check
          %p151 = pneg %p79
        $region22: #{tpu_custom_call.1} parent=15 // pred_check_branch
          %153 = sbr.rel (%p151) target = $region24
        $region23: #{tpu_custom_call.1} parent=15 // pred_region
          %s154 = sand.u32 %s69, 1
          %s155 = scalar_lea.sflag [#allocation6], %s154
          %s156 = sand.u32 %s69, 1
          %s157 = smul.addr %s156, 64
          %s158 = scalar_lea.vmem [#allocation5], %s157
          %s159 = sadd.s32 %s24, %s25
          %161 = vsyncadd %s155, 0
          %s162 = smul.addr %s159, 8
          %s163 = smul.addr %s162, 8
          %s164 = scalar_lea.hbm %s1, %s163
          %s166 = sshll.u32 %s164, 4
          %s167 = int_to_ptr.hbm [resolvable:$true] %s166
          %s168 = sshll.u32 %s158, 4
          %s169 = int_to_ptr.vmem [resolvable:$true] %s168
          %171 = dma.hbm_to_vmem [thread:$0]  %s167, 1024, %s169, %s155
        $region24: #{tpu_custom_call.1} parent=15 // pred_fallthru
          _
      $region16: #{tpu_custom_call.1} parent=5 // pred_fallthru
        _
      %p172 = scmp.le.s32.totalorder 1, %s17
      %p173 = scmp.lt.s32.totalorder %s17, 3
      %p174 = pnand %p172, %p173
      %p175 = pneg %p174
      // Predicated region
      $region25: #{tpu_custom_call.1} parent=5 // pred_check
        _
      $region26: #{tpu_custom_call.1} parent=5 // pred_check_branch
        %177 = sbr.rel (%p174) target = $region28
      $region27: #{tpu_custom_call.1} parent=5 // pred_region
        %s178 = ssub.s32 %s17, 1
        %s179 = sand.u32 %s44, 1
        %s180 = scalar_lea.sflag [#allocation3], %s179
        %s181 = sand.u32 %s44, 1
        %s182 = smul.addr %s181, 64
        %s183 = scalar_lea.vmem [#allocation2], %s182
        // Predicated region
        $region29: #{tpu_custom_call.1} parent=27 // pred_check
          %p184 = pneg %p57
        $region30: #{tpu_custom_call.1} parent=27 // pred_check_branch
          %186 = sbr.rel (%p184) target = $region32
        $region31: #{tpu_custom_call.1} parent=27 // pred_region
          %188 = dma.done %s180, 1024
        $region32: #{tpu_custom_call.1} parent=27 // pred_fallthru
          _
        %s189 = sand.u32 %s72, 1
        %s190 = scalar_lea.sflag [#allocation6], %s189
        %s191 = sand.u32 %s72, 1
        %s192 = smul.addr %s191, 64
        %s193 = scalar_lea.vmem [#allocation5], %s192
        // Predicated region
        $region33: #{tpu_custom_call.1} parent=27 // pred_check
          %p194 = pneg %p85
        $region34: #{tpu_custom_call.1} parent=27 // pred_check_branch
          %196 = sbr.rel (%p194) target = $region36
        $region35: #{tpu_custom_call.1} parent=27 // pred_region
          %198 = dma.done %s190, 1024
        $region36: #{tpu_custom_call.1} parent=27 // pred_fallthru
          _
        %s199 = sand.u32 %s44, 1
        %s200 = scalar_lea.sflag [#allocation3], %s199
        %s201 = sand.u32 %s44, 1
        %s202 = smul.addr %s201, 64
        %s203 = scalar_lea.vmem [#allocation2], %s202
        %p204 = pneg %p57
        %p205 = pneg %p54
        %s206 = sand.u32 %s72, 1
        %s207 = scalar_lea.sflag [#allocation6], %s206
        %s208 = sand.u32 %s72, 1
        %s209 = smul.addr %s208, 64
        %s210 = scalar_lea.vmem [#allocation5], %s209
        %p211 = pneg %p85
        %p212 = pneg %p82
        %p213 = pneg %p111
        %p214 = pneg %p108
        %s215 = sand.u32 %s98, 1
        %s216 = scalar_lea.sflag [#allocation4], %s215
        %s217 = sand.u32 %s98, 1
        %s218 = smul.addr %s217, 64
        %s219 = scalar_lea.vmem [#allocation7], %s218
        %s220 = sadd.s32 %s26, %s27
        %s221 = sadd.s32 %s26, %s27
        %p222 = scmp.eq.s32.totalorder %s27, 0
        // Predicated region
        $region37: #{tpu_custom_call.1} parent=27 // pred_check
          %p223 = pneg %p222
        $region38: #{tpu_custom_call.1} parent=27 // pred_check_branch
          %225 = sbr.rel (%p223) target = $region40
        $region39: #{tpu_custom_call.1} parent=27 // pred_region
          %226 = vst [vmem:[%s219] sm:$0xff] 0.0
          %227 = vst [vmem:[%s219 + $0x8] sm:$0xff] 0.0
          %228 = vst [vmem:[%s219 + $0x10] sm:$0xff] 0.0
          %229 = vst [vmem:[%s219 + $0x18] sm:$0xff] 0.0
          %230 = vst [vmem:[%s219 + $0x20] sm:$0xff] 0.0
          %231 = vst [vmem:[%s219 + $0x28] sm:$0xff] 0.0
          %232 = vst [vmem:[%s219 + $0x30] sm:$0xff] 0.0
          %233 = vst [vmem:[%s219 + $0x38] sm:$0xff] 0.0
        $region40: #{tpu_custom_call.1} parent=27 // pred_fallthru
          _
        %v234 = vld [vmem:[%s183] sm:$0xff]
        %v235 = vld [vmem:[%s183 + $0x8] sm:$0xff]
        %v236 = vld [vmem:[%s183 + $0x10] sm:$0xff]
        %v237 = vld [vmem:[%s183 + $0x18] sm:$0xff]
        %v238 = vld [vmem:[%s183 + $0x20] sm:$0xff]
        %v239 = vld [vmem:[%s183 + $0x28] sm:$0xff]
        %v240 = vld [vmem:[%s183 + $0x30] sm:$0xff]
        %v241 = vld [vmem:[%s183 + $0x38] sm:$0xff]
        %v242 = vld [vmem:[%s193] sm:$0xff]
        %v243 = vld [vmem:[%s193 + $0x8] sm:$0xff]
        %v244 = vld [vmem:[%s193 + $0x10] sm:$0xff]
        %v245 = vld [vmem:[%s193 + $0x18] sm:$0xff]
        %v246 = vld [vmem:[%s193 + $0x20] sm:$0xff]
        %v247 = vld [vmem:[%s193 + $0x28] sm:$0xff]
        %v248 = vld [vmem:[%s193 + $0x30] sm:$0xff]
        %v249 = vld [vmem:[%s193 + $0x38] sm:$0xff]
        %v250 = vand.u32 2147483647, %v234
        %v251 = vand.u32 2147483647, %v235
        %v252 = vand.u32 2147483647, %v236
        %v253 = vand.u32 2147483647, %v237
        %v254 = vand.u32 2147483647, %v238
        %v255 = vand.u32 2147483647, %v239
        %v256 = vand.u32 2147483647, %v240
        %v257 = vand.u32 2147483647, %v241
        %v258 = vsub.f32 0.0, %v250
        %v259 = vsub.f32 0.0, %v251
        %v260 = vsub.f32 0.0, %v252
        %v261 = vsub.f32 0.0, %v253
        %v262 = vsub.f32 0.0, %v254
        %v263 = vsub.f32 0.0, %v255
        %v264 = vsub.f32 0.0, %v256
        %v265 = vsub.f32 0.0, %v257
        %v266 = vmul.f32 %v258, 1.442695
        %v267 = vpow.pop %v266
        %v268 = vmul.f32 %v259, 1.442695
        %v269 = vpow.pop %v268
        %v270 = vmul.f32 %v260, 1.442695
        %v271 = vpow.pop %v270
        %v272 = vmul.f32 %v261, 1.442695
        %v273 = vpow.pop %v272
        %v274 = vmul.f32 %v262, 1.442695
        %v275 = vpow.pop %v274
        %v276 = vmul.f32 %v263, 1.442695
        %v277 = vpow.pop %v276
        %v278 = vmul.f32 %v264, 1.442695
        %v279 = vpow.pop %v278
        %v280 = vmul.f32 %v265, 1.442695
        %v281 = vpow.pop %v280
        %v282 = vmax.f32 %v234, 0.0
        %v283 = vmax.f32 %v235, 0.0
        %v284 = vmax.f32 %v236, 0.0
        %v285 = vmax.f32 %v237, 0.0
        %v286 = vmax.f32 %v238, 0.0
        %v287 = vmax.f32 %v239, 0.0
        %v288 = vmax.f32 %v240, 0.0
        %v289 = vmax.f32 %v241, 0.0
        %v290 = vmul.f32 %v234, %v242
        %v291 = vmul.f32 %v235, %v243
        %v292 = vmul.f32 %v236, %v244
        %v293 = vmul.f32 %v237, %v245
        %v294 = vmul.f32 %v238, %v246
        %v295 = vmul.f32 %v239, %v247
        %v296 = vmul.f32 %v240, %v248
        %v297 = vmul.f32 %v241, %v249
        %v298 = vsub.f32 %v282, %v290
        %v299 = vsub.f32 %v283, %v291
        %v300 = vsub.f32 %v284, %v292
        %v301 = vsub.f32 %v285, %v293
        %v302 = vsub.f32 %v286, %v294
        %v303 = vsub.f32 %v287, %v295
        %v304 = vsub.f32 %v288, %v296
        %v305 = vsub.f32 %v289, %v297
        %v306 = vadd.f32 %v267, 1.0
        %v307 = vlog2.pop %v306
        %v308 = vmul.f32 %v307, 0.6931472
        %v309 = vmul.f32 -0.5, %v267
        %v310 = vadd.f32 %v309, 1.0
        %v311 = vmul.f32 %v310, %v267
        %v312 = vand.u32 2147483647, %v267
        %vm313 = vcmp.lt.f32.partialorder %v312, 0.0004427343
        %v314 = vsel %vm313, %v311, %v308
        %v315 = vadd.f32 %v269, 1.0
        %v316 = vlog2.pop %v315
        %v317 = vmul.f32 %v316, 0.6931472
        %v318 = vmul.f32 -0.5, %v269
        %v319 = vadd.f32 %v318, 1.0
        %v320 = vmul.f32 %v319, %v269
        %v321 = vand.u32 2147483647, %v269
        %vm322 = vcmp.lt.f32.partialorder %v321, 0.0004427343
        %v323 = vsel %vm322, %v320, %v317
        %v324 = vadd.f32 %v271, 1.0
        %v325 = vlog2.pop %v324
        %v326 = vmul.f32 %v325, 0.6931472
        %v327 = vmul.f32 -0.5, %v271
        %v328 = vadd.f32 %v327, 1.0
        %v329 = vmul.f32 %v328, %v271
        %v330 = vand.u32 2147483647, %v271
        %vm331 = vcmp.lt.f32.partialorder %v330, 0.0004427343
        %v332 = vsel %vm331, %v329, %v326
        %v333 = vadd.f32 %v273, 1.0
        %v334 = vlog2.pop %v333
        %v335 = vmul.f32 %v334, 0.6931472
        %v336 = vmul.f32 -0.5, %v273
        %v337 = vadd.f32 %v336, 1.0
        %v338 = vmul.f32 %v337, %v273
        %v339 = vand.u32 2147483647, %v273
        %vm340 = vcmp.lt.f32.partialorder %v339, 0.0004427343
        %v341 = vsel %vm340, %v338, %v335
        %v342 = vadd.f32 %v275, 1.0
        %v343 = vlog2.pop %v342
        %v344 = vmul.f32 %v343, 0.6931472
        %v345 = vmul.f32 -0.5, %v275
        %v346 = vadd.f32 %v345, 1.0
        %v347 = vmul.f32 %v346, %v275
        %v348 = vand.u32 2147483647, %v275
        %vm349 = vcmp.lt.f32.partialorder %v348, 0.0004427343
        %v350 = vsel %vm349, %v347, %v344
        %v351 = vadd.f32 %v277, 1.0
        %v352 = vlog2.pop %v351
        %v353 = vmul.f32 %v352, 0.6931472
        %v354 = vmul.f32 -0.5, %v277
        %v355 = vadd.f32 %v354, 1.0
        %v356 = vmul.f32 %v355, %v277
        %v357 = vand.u32 2147483647, %v277
        %vm358 = vcmp.lt.f32.partialorder %v357, 0.0004427343
        %v359 = vsel %vm358, %v356, %v353
        %v360 = vadd.f32 %v279, 1.0
        %v361 = vlog2.pop %v360
        %v362 = vmul.f32 %v361, 0.6931472
        %v363 = vmul.f32 -0.5, %v279
        %v364 = vadd.f32 %v363, 1.0
        %v365 = vmul.f32 %v364, %v279
        %v366 = vand.u32 2147483647, %v279
        %vm367 = vcmp.lt.f32.partialorder %v366, 0.0004427343
        %v368 = vsel %vm367, %v365, %v362
        %v369 = vadd.f32 %v281, 1.0
        %v370 = vlog2.pop %v369
        %v371 = vmul.f32 %v370, 0.6931472
        %v372 = vmul.f32 -0.5, %v281
        %v373 = vadd.f32 %v372, 1.0
        %v374 = vmul.f32 %v373, %v281
        %v375 = vand.u32 2147483647, %v281
        %vm376 = vcmp.lt.f32.partialorder %v375, 0.0004427343
        %v377 = vsel %vm376, %v374, %v371
        %v378 = vadd.f32 %v298, %v314
        %v379 = vadd.f32 %v299, %v323
        %v380 = vadd.f32 %v300, %v332
        %v381 = vadd.f32 %v301, %v341
        %v382 = vadd.f32 %v302, %v350
        %v383 = vadd.f32 %v303, %v359
        %v384 = vadd.f32 %v304, %v368
        %v385 = vadd.f32 %v305, %v377
        %vm386 = vcmp.ge.f32.partialorder %v234, 0.0
        %vm387 = vcmp.ge.f32.partialorder %v235, 0.0
        %vm388 = vcmp.ge.f32.partialorder %v236, 0.0
        %vm389 = vcmp.ge.f32.partialorder %v237, 0.0
        %vm390 = vcmp.ge.f32.partialorder %v238, 0.0
        %vm391 = vcmp.ge.f32.partialorder %v239, 0.0
        %vm392 = vcmp.ge.f32.partialorder %v240, 0.0
        %vm393 = vcmp.ge.f32.partialorder %v241, 0.0
        %v394 = vsel %vm386, 1.0, %v267
        %v395 = vsel %vm387, 1.0, %v269
        %v396 = vsel %vm388, 1.0, %v271
        %v397 = vsel %vm389, 1.0, %v273
        %v398 = vsel %vm390, 1.0, %v275
        %v399 = vsel %vm391, 1.0, %v277
        %v400 = vsel %vm392, 1.0, %v279
        %v401 = vsel %vm393, 1.0, %v281
        %v402 = vadd.f32 %v267, 1.0
        %v403 = vadd.f32 %v269, 1.0
        %v404 = vadd.f32 %v271, 1.0
        %v405 = vadd.f32 %v273, 1.0
        %v406 = vadd.f32 %v275, 1.0
        %v407 = vadd.f32 %v277, 1.0
        %v408 = vadd.f32 %v279, 1.0
        %v409 = vadd.f32 %v281, 1.0
        %v410 = vrcp.pop %v402
        %v411 = vmul.f32 %v402, %v410
        %v412 = vsub.f32 1.0, %v411
        %v413 = vmul.f32 %v410, %v412
        %v414 = vadd.f32 %v410, %v413
        %vm415 = vweird.f32 %v402
        %vm416 = vweird.f32 %v410
        %vm417 = vmor %vm415, %vm416
        %v418 = vsel %vm417, %v410, %v414
        %v419 = vand.u32 2147483647, %v402
        %vm420 = vcmp.eq.f32.partialorder %v419, 8.507059e+37
        %v421 = vand.u32 %v402, 2147483648
        %v422 = vor.u32 1.1754944e-38, %v421
        %v423 = vsel %vm420, %v422, %v418
        %v424 = vmul.f32 %v394, %v423
        %v425 = vrcp.pop %v403
        %v426 = vmul.f32 %v403, %v425
        %v427 = vsub.f32 1.0, %v426
        %v428 = vmul.f32 %v425, %v427
        %v429 = vadd.f32 %v425, %v428
        %vm430 = vweird.f32 %v403
        %vm431 = vweird.f32 %v425
        %vm432 = vmor %vm430, %vm431
        %v433 = vsel %vm432, %v425, %v429
        %v434 = vand.u32 2147483647, %v403
        %vm435 = vcmp.eq.f32.partialorder %v434, 8.507059e+37
        %v436 = vand.u32 %v403, 2147483648
        %v437 = vor.u32 1.1754944e-38, %v436
        %v438 = vsel %vm435, %v437, %v433
        %v439 = vmul.f32 %v395, %v438
        %v440 = vrcp.pop %v404
        %v441 = vmul.f32 %v404, %v440
        %v442 = vsub.f32 1.0, %v441
        %v443 = vmul.f32 %v440, %v442
        %v444 = vadd.f32 %v440, %v443
        %vm445 = vweird.f32 %v404
        %vm446 = vweird.f32 %v440
        %vm447 = vmor %vm445, %vm446
        %v448 = vsel %vm447, %v440, %v444
        %v449 = vand.u32 2147483647, %v404
        %vm450 = vcmp.eq.f32.partialorder %v449, 8.507059e+37
        %v451 = vand.u32 %v404, 2147483648
        %v452 = vor.u32 1.1754944e-38, %v451
        %v453 = vsel %vm450, %v452, %v448
        %v454 = vmul.f32 %v396, %v453
        %v455 = vrcp.pop %v405
        %v456 = vmul.f32 %v405, %v455
        %v457 = vsub.f32 1.0, %v456
        %v458 = vmul.f32 %v455, %v457
        %v459 = vadd.f32 %v455, %v458
        %vm460 = vweird.f32 %v405
        %vm461 = vweird.f32 %v455
        %vm462 = vmor %vm460, %vm461
        %v463 = vsel %vm462, %v455, %v459
        %v464 = vand.u32 2147483647, %v405
        %vm465 = vcmp.eq.f32.partialorder %v464, 8.507059e+37
        %v466 = vand.u32 %v405, 2147483648
        %v467 = vor.u32 1.1754944e-38, %v466
        %v468 = vsel %vm465, %v467, %v463
        %v469 = vmul.f32 %v397, %v468
        %v470 = vrcp.pop %v406
        %v471 = vmul.f32 %v406, %v470
        %v472 = vsub.f32 1.0, %v471
        %v473 = vmul.f32 %v470, %v472
        %v474 = vadd.f32 %v470, %v473
        %vm475 = vweird.f32 %v406
        %vm476 = vweird.f32 %v470
        %vm477 = vmor %vm475, %vm476
        %v478 = vsel %vm477, %v470, %v474
        %v479 = vand.u32 2147483647, %v406
        %vm480 = vcmp.eq.f32.partialorder %v479, 8.507059e+37
        %v481 = vand.u32 %v406, 2147483648
        %v482 = vor.u32 1.1754944e-38, %v481
        %v483 = vsel %vm480, %v482, %v478
        %v484 = vmul.f32 %v398, %v483
        %v485 = vrcp.pop %v407
        %v486 = vmul.f32 %v407, %v485
        %v487 = vsub.f32 1.0, %v486
        %v488 = vmul.f32 %v485, %v487
        %v489 = vadd.f32 %v485, %v488
        %vm490 = vweird.f32 %v407
        %vm491 = vweird.f32 %v485
        %vm492 = vmor %vm490, %vm491
        %v493 = vsel %vm492, %v485, %v489
        %v494 = vand.u32 2147483647, %v407
        %vm495 = vcmp.eq.f32.partialorder %v494, 8.507059e+37
        %v496 = vand.u32 %v407, 2147483648
        %v497 = vor.u32 1.1754944e-38, %v496
        %v498 = vsel %vm495, %v497, %v493
        %v499 = vmul.f32 %v399, %v498
        %v500 = vrcp.pop %v408
        %v501 = vmul.f32 %v408, %v500
        %v502 = vsub.f32 1.0, %v501
        %v503 = vmul.f32 %v500, %v502
        %v504 = vadd.f32 %v500, %v503
        %vm505 = vweird.f32 %v408
        %vm506 = vweird.f32 %v500
        %vm507 = vmor %vm505, %vm506
        %v508 = vsel %vm507, %v500, %v504
        %v509 = vand.u32 2147483647, %v408
        %vm510 = vcmp.eq.f32.partialorder %v509, 8.507059e+37
        %v511 = vand.u32 %v408, 2147483648
        %v512 = vor.u32 1.1754944e-38, %v511
        %v513 = vsel %vm510, %v512, %v508
        %v514 = vmul.f32 %v400, %v513
        %v515 = vrcp.pop %v409
        %v516 = vmul.f32 %v409, %v515
        %v517 = vsub.f32 1.0, %v516
        %v518 = vmul.f32 %v515, %v517
        %v519 = vadd.f32 %v515, %v518
        %vm520 = vweird.f32 %v409
        %vm521 = vweird.f32 %v515
        %vm522 = vmor %vm520, %vm521
        %v523 = vsel %vm522, %v515, %v519
        %v524 = vand.u32 2147483647, %v409
        %vm525 = vcmp.eq.f32.partialorder %v524, 8.507059e+37
        %v526 = vand.u32 %v409, 2147483648
        %v527 = vor.u32 1.1754944e-38, %v526
        %v528 = vsel %vm525, %v527, %v523
        %v529 = vmul.f32 %v401, %v528
        %v530 = vmul.f32 %v242, -0.5
        %v531 = vmul.f32 %v243, -0.5
        %v532 = vmul.f32 %v244, -0.5
        %v533 = vmul.f32 %v245, -0.5
        %v534 = vmul.f32 %v246, -0.5
        %v535 = vmul.f32 %v247, -0.5
        %v536 = vmul.f32 %v248, -0.5
        %v537 = vmul.f32 %v249, -0.5
        %v538 = vadd.f32 %v530, 0.75
        %v539 = vadd.f32 %v531, 0.75
        %v540 = vadd.f32 %v532, 0.75
        %v541 = vadd.f32 %v533, 0.75
        %v542 = vadd.f32 %v534, 0.75
        %v543 = vadd.f32 %v535, 0.75
        %v544 = vadd.f32 %v536, 0.75
        %v545 = vadd.f32 %v537, 0.75
        %v546 = vsub.f32 %v242, %v424
        %v547 = vsub.f32 %v243, %v439
        %v548 = vsub.f32 %v244, %v454
        %v549 = vsub.f32 %v245, %v469
        %v550 = vsub.f32 %v246, %v484
        %v551 = vsub.f32 %v247, %v499
        %v552 = vsub.f32 %v248, %v514
        %v553 = vsub.f32 %v249, %v529
        %v554 = vand.u32 2147483647, %v546
        %v555 = vand.u32 2147483647, %v547
        %v556 = vand.u32 2147483647, %v548
        %v557 = vand.u32 2147483647, %v549
        %v558 = vand.u32 2147483647, %v550
        %v559 = vand.u32 2147483647, %v551
        %v560 = vand.u32 2147483647, %v552
        %v561 = vand.u32 2147483647, %v553
        %v562 = vrsqrt.pop %v554
        %v563 = vmul.f32 %v562, %v554
        %v564 = vmul.f32 %v563, %v562
        %v565 = vmul.f32 0.5, %v564
        %v566 = vsub.f32 1.5, %v565
        %v567 = vmul.f32 %v562, %v566
        %v568 = vmul.f32 %v554, %v567
        %vm569 = vcmp.eq.f32.partialorder %v554, inf
        %v570 = vsel %vm569, %v554, %v568
        %vm571 = vcmp.eq.f32.partialorder %v554, 0.0
        %v572 = vand.u32 %v554, 2147483648
        %v573 = vsel %vm571, %v572, %v570
        %v574 = vrsqrt.pop %v555
        %v575 = vmul.f32 %v574, %v555
        %v576 = vmul.f32 %v575, %v574
        %v577 = vmul.f32 0.5, %v576
        %v578 = vsub.f32 1.5, %v577
        %v579 = vmul.f32 %v574, %v578
        %v580 = vmul.f32 %v555, %v579
        %vm581 = vcmp.eq.f32.partialorder %v555, inf
        %v582 = vsel %vm581, %v555, %v580
        %vm583 = vcmp.eq.f32.partialorder %v555, 0.0
        %v584 = vand.u32 %v555, 2147483648
        %v585 = vsel %vm583, %v584, %v582
        %v586 = vrsqrt.pop %v556
        %v587 = vmul.f32 %v586, %v556
        %v588 = vmul.f32 %v587, %v586
        %v589 = vmul.f32 0.5, %v588
        %v590 = vsub.f32 1.5, %v589
        %v591 = vmul.f32 %v586, %v590
        %v592 = vmul.f32 %v556, %v591
        %vm593 = vcmp.eq.f32.partialorder %v556, inf
        %v594 = vsel %vm593, %v556, %v592
        %vm595 = vcmp.eq.f32.partialorder %v556, 0.0
        %v596 = vand.u32 %v556, 2147483648
        %v597 = vsel %vm595, %v596, %v594
        %v598 = vrsqrt.pop %v557
        %v599 = vmul.f32 %v598, %v557
        %v600 = vmul.f32 %v599, %v598
        %v601 = vmul.f32 0.5, %v600
        %v602 = vsub.f32 1.5, %v601
        %v603 = vmul.f32 %v598, %v602
        %v604 = vmul.f32 %v557, %v603
        %vm605 = vcmp.eq.f32.partialorder %v557, inf
        %v606 = vsel %vm605, %v557, %v604
        %vm607 = vcmp.eq.f32.partialorder %v557, 0.0
        %v608 = vand.u32 %v557, 2147483648
        %v609 = vsel %vm607, %v608, %v606
        %v610 = vrsqrt.pop %v558
        %v611 = vmul.f32 %v610, %v558
        %v612 = vmul.f32 %v611, %v610
        %v613 = vmul.f32 0.5, %v612
        %v614 = vsub.f32 1.5, %v613
        %v615 = vmul.f32 %v610, %v614
        %v616 = vmul.f32 %v558, %v615
        %vm617 = vcmp.eq.f32.partialorder %v558, inf
        %v618 = vsel %vm617, %v558, %v616
        %vm619 = vcmp.eq.f32.partialorder %v558, 0.0
        %v620 = vand.u32 %v558, 2147483648
        %v621 = vsel %vm619, %v620, %v618
        %v622 = vrsqrt.pop %v559
        %v623 = vmul.f32 %v622, %v559
        %v624 = vmul.f32 %v623, %v622
        %v625 = vmul.f32 0.5, %v624
        %v626 = vsub.f32 1.5, %v625
        %v627 = vmul.f32 %v622, %v626
        %v628 = vmul.f32 %v559, %v627
        %vm629 = vcmp.eq.f32.partialorder %v559, inf
        %v630 = vsel %vm629, %v559, %v628
        %vm631 = vcmp.eq.f32.partialorder %v559, 0.0
        %v632 = vand.u32 %v559, 2147483648
        %v633 = vsel %vm631, %v632, %v630
        %v634 = vrsqrt.pop %v560
        %v635 = vmul.f32 %v634, %v560
        %v636 = vmul.f32 %v635, %v634
        %v637 = vmul.f32 0.5, %v636
        %v638 = vsub.f32 1.5, %v637
        %v639 = vmul.f32 %v634, %v638
        %v640 = vmul.f32 %v560, %v639
        %vm641 = vcmp.eq.f32.partialorder %v560, inf
        %v642 = vsel %vm641, %v560, %v640
        %vm643 = vcmp.eq.f32.partialorder %v560, 0.0
        %v644 = vand.u32 %v560, 2147483648
        %v645 = vsel %vm643, %v644, %v642
        %v646 = vrsqrt.pop %v561
        %v647 = vmul.f32 %v646, %v561
        %v648 = vmul.f32 %v647, %v646
        %v649 = vmul.f32 0.5, %v648
        %v650 = vsub.f32 1.5, %v649
        %v651 = vmul.f32 %v646, %v650
        %v652 = vmul.f32 %v561, %v651
        %vm653 = vcmp.eq.f32.partialorder %v561, inf
        %v654 = vsel %vm653, %v561, %v652
        %vm655 = vcmp.eq.f32.partialorder %v561, 0.0
        %v656 = vand.u32 %v561, 2147483648
        %v657 = vsel %vm655, %v656, %v654
        %v658 = vmul.f32 %v554, %v573
        %v659 = vmul.f32 %v555, %v585
        %v660 = vmul.f32 %v556, %v597
        %v661 = vmul.f32 %v557, %v609
        %v662 = vmul.f32 %v558, %v621
        %v663 = vmul.f32 %v559, %v633
        %v664 = vmul.f32 %v560, %v645
        %v665 = vmul.f32 %v561, %v657
        %v666 = vmul.f32 %v538, %v658
        %v667 = vmul.f32 %v539, %v659
        %v668 = vmul.f32 %v540, %v660
        %v669 = vmul.f32 %v541, %v661
        %v670 = vmul.f32 %v542, %v662
        %v671 = vmul.f32 %v543, %v663
        %v672 = vmul.f32 %v544, %v664
        %v673 = vmul.f32 %v545, %v665
        %v674 = vmul.f32 %v378, %v666
        %v675 = vmul.f32 %v379, %v667
        %v676 = vmul.f32 %v380, %v668
        %v677 = vmul.f32 %v381, %v669
        %v678 = vmul.f32 %v382, %v670
        %v679 = vmul.f32 %v383, %v671
        %v680 = vmul.f32 %v384, %v672
        %v681 = vmul.f32 %v385, %v673
        %s682 = sadd.s32 %s26, %s27
        %s683 = smul.u32 %s682, 8
        %v684 = vlaneseq
        %v685 = vshrl.u32 %v684, 7
        %v686 = vstv %s683
        %v687 = vadd.s32 %v686, %v685
        %v688 = vlaneseq
        %v689 = vand.u32 %v688, 127
        %v690 = vadd.s32 %v689, 128
        %v691 = vadd.s32 %v689, 256
        %v692 = vadd.s32 %v689, 384
        %v693 = vadd.s32 %v689, 512
        %v694 = vadd.s32 %v689, 640
        %v695 = vadd.s32 %v689, 768
        %v696 = vadd.s32 %v689, 896
        %vm697 = vcmp.lt.s32.totalorder %v687, 2
        %vm698 = vcmp.eq.s32.totalorder %v687, 2
        %vm699 = vcmp.lt.s32.totalorder %v689, 0
        %vm700 = vcmp.lt.s32.totalorder %v690, 0
        %vm701 = vcmp.lt.s32.totalorder %v691, 0
        %vm702 = vcmp.lt.s32.totalorder %v692, 0
        %vm703 = vcmp.lt.s32.totalorder %v693, 0
        %vm704 = vcmp.lt.s32.totalorder %v694, 0
        %vm705 = vcmp.lt.s32.totalorder %v695, 0
        %vm706 = vcmp.lt.s32.totalorder %v696, 0
        %vm707 = vmand %vm698, %vm699
        %vm708 = vmand %vm698, %vm700
        %vm709 = vmand %vm698, %vm701
        %vm710 = vmand %vm698, %vm702
        %vm711 = vmand %vm698, %vm703
        %vm712 = vmand %vm698, %vm704
        %vm713 = vmand %vm698, %vm705
        %vm714 = vmand %vm698, %vm706
        %vm715 = vmor %vm697, %vm707
        %vm716 = vmor %vm697, %vm708
        %vm717 = vmor %vm697, %vm709
        %vm718 = vmor %vm697, %vm710
        %vm719 = vmor %vm697, %vm711
        %vm720 = vmor %vm697, %vm712
        %vm721 = vmor %vm697, %vm713
        %vm722 = vmor %vm697, %vm714
        %v723 = vsel %vm715, %v674, 0.0
        %v724 = vsel %vm716, %v675, 0.0
        %v725 = vsel %vm717, %v676, 0.0
        %v726 = vsel %vm718, %v677, 0.0
        %v727 = vsel %vm719, %v678, 0.0
        %v728 = vsel %vm720, %v679, 0.0
        %v729 = vsel %vm721, %v680, 0.0
        %v730 = vsel %vm722, %v681, 0.0
        %v731 = vld [vmem:[%s219] sm:$0xff]
        %v732 = vld [vmem:[%s219 + $0x8] sm:$0xff]
        %v733 = vld [vmem:[%s219 + $0x10] sm:$0xff]
        %v734 = vld [vmem:[%s219 + $0x18] sm:$0xff]
        %v735 = vld [vmem:[%s219 + $0x20] sm:$0xff]
        %v736 = vld [vmem:[%s219 + $0x28] sm:$0xff]
        %v737 = vld [vmem:[%s219 + $0x30] sm:$0xff]
        %v738 = vld [vmem:[%s219 + $0x38] sm:$0xff]
        %v739 = vadd.f32 %v731, %v723
        %v740 = vadd.f32 %v732, %v724
        %v741 = vadd.f32 %v733, %v725
        %v742 = vadd.f32 %v734, %v726
        %v743 = vadd.f32 %v735, %v727
        %v744 = vadd.f32 %v736, %v728
        %v745 = vadd.f32 %v737, %v729
        %v746 = vadd.f32 %v738, %v730
        %747 = vst [vmem:[%s219] sm:$0xff] %v739
        %748 = vst [vmem:[%s219 + $0x8] sm:$0xff] %v740
        %749 = vst [vmem:[%s219 + $0x10] sm:$0xff] %v741
        %750 = vst [vmem:[%s219 + $0x18] sm:$0xff] %v742
        %751 = vst [vmem:[%s219 + $0x20] sm:$0xff] %v743
        %752 = vst [vmem:[%s219 + $0x28] sm:$0xff] %v744
        %753 = vst [vmem:[%s219 + $0x30] sm:$0xff] %v745
        %754 = vst [vmem:[%s219 + $0x38] sm:$0xff] %v746
        %s755 = sand.u32 %s98, 1
        %s756 = scalar_lea.sflag [#allocation4], %s755
        %s757 = sand.u32 %s98, 1
        %s758 = smul.addr %s757, 64
        %s759 = scalar_lea.vmem [#allocation7], %s758
        // Predicated region
        $region41: #{tpu_custom_call.1} parent=27 // pred_check
          %p760 = pneg %p108
        $region42: #{tpu_custom_call.1} parent=27 // pred_check_branch
          %762 = sbr.rel (%p760) target = $region44
        $region43: #{tpu_custom_call.1} parent=27 // pred_region
          %764 = vsyncadd %s756, 0
          %s765 = smul.addr %s26, 8
          %s766 = smul.addr %s765, 8
          %s767 = scalar_lea.hbm %s2, %s766
          %s769 = sshll.u32 %s759, 4
          %s770 = int_to_ptr.vmem [resolvable:$true] %s769
          %s771 = sshll.u32 %s767, 4
          %s772 = int_to_ptr.hbm [resolvable:$true] %s771
          %774 = dma.vmem_to_hbm [thread:$0]  %s770, 1024, %s772, %s756
        $region44: #{tpu_custom_call.1} parent=27 // pred_fallthru
          _
      $region28: #{tpu_custom_call.1} parent=5 // pred_fallthru
        _
      %p775 = scmp.le.s32.totalorder 2, %s17
      // Predicated region
      $region45: #{tpu_custom_call.1} parent=5 // pred_check
        %p776 = pneg %p775
      $region46: #{tpu_custom_call.1} parent=5 // pred_check_branch
        %778 = sbr.rel (%p776) target = $region48
      $region47: #{tpu_custom_call.1} parent=5 // pred_region
        %s779 = ssub.s32 %s17, 2
        // Predicated region
        $region49: #{tpu_custom_call.1} parent=47 // pred_check
          %p780 = pneg %p114
        $region50: #{tpu_custom_call.1} parent=47 // pred_check_branch
          %782 = sbr.rel (%p780) target = $region52
        $region51: #{tpu_custom_call.1} parent=47 // pred_region
          %s783 = sand.u32 %s99, 1
          %s784 = scalar_lea.sflag [#allocation4], %s783
          %s785 = sand.u32 %s99, 1
          %s786 = smul.addr %s785, 64
          %s787 = scalar_lea.vmem [#allocation7], %s786
          %789 = dma.done %s784, 1024
        $region52: #{tpu_custom_call.1} parent=47 // pred_fallthru
          _
      $region48: #{tpu_custom_call.1} parent=5 // pred_fallthru
        _
    $region6: #{tpu_custom_call.1} parent=1 // loop_footer
      %s21 = sadd.s32 1, %s17
    $region7: #{tpu_custom_call.1} parent=1 // loop_footer_branch
      %16 = sbr.rel target = $region3
    $region8: #{tpu_custom_call.1} parent=1 // loop_exit
      _
    %790 = vsyncpa [#allocation3], 1
    %s791 = scalar_lea.sflag [#allocation3], 1
    %792 = vsyncpa %s791, 1
    %793 = vsyncpa [#allocation6], 1
    %s794 = scalar_lea.sflag [#allocation6], 1
    %795 = vsyncpa %s794, 1
    %796 = vsyncpa [#allocation4], 1
    %s797 = scalar_lea.sflag [#allocation4], 1
    %798 = vsyncpa %s797, 1

</llo_original>
